<compile_context>
chip_gen: v7x
topology: tpu7x:2x2x1
jax: 0.10.0
libtpu: 0.0.40
codegen_flags: <defaults>
</compile_context>

<pallas_src>
import jax
import jax.numpy as jnp
from jax.experimental import pallas as pl
from jax.experimental.pallas import tpu as pltpu


# Below this many bytes, plain XLA elementwise beats the pallas_call fixed
# cost and may fuse with the surrounding backward graph.
_SMALL_BYTES = 2 * 1024 * 1024
# Minimum grid steps: >= 4 keeps the DMA pipeline full and lets v7x's two
# TensorCores both get work via dimension_semantics=("parallel",).
_MIN_GRID_STEPS = 4


def _tile_params():
    """(per-buffer tile bytes, scoped-VMEM limit) — generation-aware."""
    try:
        kind = jax.devices()[0].device_kind.lower()
    except Exception:  # pragma: no cover - defensive; defaults are safe anywhere
        kind = ""
    if "v7" in kind:
        # v7x: ~3.2 TB/s HBM -> 8 MiB tiles keep the ~0.35 us per-step cost
        # at ~7%; 2(in+out) x 2(double-buffer) x 8 MiB = 32 MiB pipelined VMEM,
        # comfortably under v7x's 64 MiB physical VMEM with 40 MiB scoped.
        return 8 * 1024 * 1024, 40 * 1024 * 1024
    # v5e / v6e (~0.82 / ~1.3 TB/s): per-step overhead is already <6% at
    # 4 MiB tiles; bigger tiles only raise scoped-VMEM pressure (v5e default
    # is 16 MiB) for no bandwidth gain. 32 MiB scoped is plenty and well under
    # the 128 MiB physical VMEM on both parts.
    return 4 * 1024 * 1024, 32 * 1024 * 1024


# ---------------------------------------------------------------------------
# Pallas kernel: o = -lambda * g (backward hot path, VPU elementwise)
# ---------------------------------------------------------------------------
def _neg_scale_kernel(lam_ref, g_ref, o_ref):
    # lam_ref lives in SMEM (scalar prefetch): one scalar read per grid step.
    neg_lam = -lam_ref[0]  # f32
    # Multiply in f32, cast once at the end: avoids double-rounding -lambda
    # when the gradient is bf16/fp16. No-op cast for f32 gradients.
    o_ref[...] = (g_ref[...].astype(jnp.float32) * neg_lam).astype(o_ref.dtype)


def _pick_lane_cols(total_elems):
    """Largest lane-dense width (multiple of 128) dividing the flat size."""
    for cols in (4096, 2048, 1024, 512, 256, 128):
        if total_elems % cols == 0:
            return cols
    return None


def _block_rows(rows, cols, itemsize, tile_bytes):
    """Row block: ~tile_bytes per buffer, but never a single-step grid.

    Multiple of 32 rows keeps f32 (8,128) / bf16 (16,128) / int8 (32,128)
    sublane tiling legal on all generations.
    """
    target = max(32, (tile_bytes // (cols * itemsize) // 32) * 32)
    # Cap so pl.cdiv(rows, br) >= _MIN_GRID_STEPS whenever rows allow it:
    # a grid of length 1 has zero pipelining and wastes v7x's second core.
    cap = max(32, (rows // _MIN_GRID_STEPS // 32) * 32)
    return max(32, min(target, cap))


def _reverse_grad_pallas(g2d, lam):
    rows, cols = g2d.shape
    itemsize = jnp.dtype(g2d.dtype).itemsize
    tile_bytes, vmem_limit = _tile_params()
    br = _block_rows(rows, cols, itemsize, tile_bytes)
    grid = (pl.cdiv(rows, br),)
    lam_arr = jnp.asarray(lam, dtype=jnp.float32).reshape((1,))
    return pl.pallas_call(
        _neg_scale_kernel,
        out_shape=jax.ShapeDtypeStruct(g2d.shape, g2d.dtype),
        grid_spec=pltpu.PrefetchScalarGridSpec(
            num_scalar_prefetch=1,
            grid=grid,
            in_specs=[pl.BlockSpec((br, cols), lambda i, lam_ref: (i, 0))],
            out_specs=pl.BlockSpec((br, cols), lambda i, lam_ref: (i, 0)),
        ),
        # Alias the cotangent onto the output (index 1: lam_arr is input 0).
        # HBM traffic stays 1R+1W (the roofline), but peak HBM footprint drops
        # and XLA can reuse the cotangent buffer when it is donatable.
        input_output_aliases={1: 0},
        compiler_params=pltpu.CompilerParams(
            # Independent output tiles -> shard grid across v7x's 2 TCs.
            dimension_semantics=("parallel",),
            vmem_limit_bytes=vmem_limit,
        ),
    )(lam_arr, g2d)


def _reverse_grad(g, lam):
    if g.size == 0:
        return g
    nbytes = g.size * jnp.dtype(g.dtype).itemsize
    neg_lam = (-jnp.asarray(lam, dtype=jnp.float32)).astype(g.dtype)
    if nbytes < _SMALL_BYTES:
        # Small gradient: fused XLA elementwise is strictly cheaper than a
        # launch and can fuse with the rest of the backward pass.
        return g * neg_lam
    cols = _pick_lane_cols(g.size)
    if cols is None:
        # TODO(synk): flat sizes not divisible by 128 fall back to XLA; a
        # lane-masked Pallas path is not worth it for this memory-bound op.
        return g * neg_lam
    # Lane-dense flatten (free for row-major contiguous arrays, any rank).
    g2d = g.reshape(g.size // cols, cols)
    return _reverse_grad_pallas(g2d, lam).reshape(g.shape)


# ---------------------------------------------------------------------------
# custom_vjp wiring: identity forward, -lambda * g backward
# ---------------------------------------------------------------------------
@jax.custom_vjp
def _grl(x, lam):
    return x  # forward is a pure identity: no kernel, no HBM traffic


def _grl_fwd(x, lam):
    return x, lam


def _grl_bwd(lam, g):
    # lambda is non-trainable (matches the PyTorch Function returning None).
    return _reverse_grad(g, lam), jnp.zeros_like(lam)


_grl.defvjp(_grl_fwd, _grl_bwd)


def gradient_reversal(x, lambda_=1.0):
    lam = jnp.asarray(lambda_, dtype=jnp.float32)
    return _grl(x, lam)


class GradientReversal:
    """JAX/Pallas port of the PyTorch GradientReversal module."""

    def __init__(self, lambda_=1.0):
        self.lambda_ = float(lambda_)

    def __call__(self, x):
        return gradient_reversal(x, self.lambda_)


# ---------------------------------------------------------------------------
# Demo / smoke test
# ---------------------------------------------------------------------------
if __name__ == "__main__":
    key = jax.random.PRNGKey(0)
    k1, k2, k3 = jax.random.split(key, 3)

    grl = GradientReversal(lambda_=0.5)

    # --- small path (PyTorch example shape; backward uses the XLA bypass) ---
    x_small = jax.random.normal(k1, (16, 128), dtype=jnp.float32)
    y_small = jax.block_until_ready(grl(x_small))
    assert y_small.shape == x_small.shape and y_small.dtype == x_small.dtype
    assert bool(jnp.all(y_small == x_small))
    gx_small = jax.block_until_ready(
        jax.grad(lambda v: jnp.sum(gradient_reversal(v, 0.5)))(x_small))
    assert bool(jnp.allclose(gx_small, jnp.full_like(x_small, -0.5)))

    # --- Pallas path, f32 (4 MiB: crosses the 2 MiB dispatch threshold) -----
    x_big = jax.random.normal(k2, (1024, 1024), dtype=jnp.float32)
    y_big = jax.block_until_ready(grl(x_big))
    assert bool(jnp.all(y_big == x_big))

    gx_big = jax.block_until_ready(
        jax.grad(lambda v: jnp.sum(gradient_reversal(v, 0.75)))(x_big))
    assert bool(jnp.allclose(gx_big, jnp.full_like(x_big, -0.75)))

    # Non-uniform cotangent through the Pallas kernel: d/dv sum(grl(v) * c)
    gx_big2 = jax.block_until_ready(
        jax.grad(lambda v: jnp.sum(gradient_reversal(v, 0.5) * x_big))(x_big))
    assert bool(jnp.allclose(gx_big2, -0.5 * x_big, rtol=1e-6, atol=1e-6))

    # --- Pallas path, bf16 (exercises the f32-multiply-then-cast path) ------
    x_bf16 = jax.random.normal(k3, (1024, 1024), dtype=jnp.bfloat16)
    gx_bf16 = jax.block_until_ready(
        jax.grad(lambda v: jnp.sum(gradient_reversal(v, 0.5).astype(jnp.float32)))(
            x_bf16))
    assert gx_bf16.dtype == jnp.bfloat16
    assert bool(jnp.allclose(gx_bf16.astype(jnp.float32), -0.5, rtol=1e-2, atol=1e-2))

    print("KERNEL_OK")
</pallas_src>

<mosaic_0001>
module attributes {stable_mosaic.version = 11 : i64} {
  func.func @_neg_scale_kernel(%arg0: i32, %arg1: memref<1xf32, #tpu.memory_space<smem>>, %arg2: memref<64x4096xf32, #tpu.memory_space<vmem>>, %arg3: memref<64x4096xf32, #tpu.memory_space<vmem>>) attributes {dimension_semantics = [#tpu.dimension_semantics<parallel>], iteration_bounds = array<i64: 4>, scalar_prefetch = 1 : i64, scratch_operands = 0 : i64, tpu.core_type = #tpu.core_type<tc>, window_params = [{transform_indices = @transform_0, window_bounds = array<i64: 64, 4096>}, {transform_indices = @transform_1, window_bounds = array<i64: 64, 4096>}]} {
    %c0 = arith.constant 0 : index
    %0 = memref.load %arg1[%c0] : memref<1xf32, #tpu.memory_space<smem>>
    %cst = arith.constant 0.000000e+00 : f32
    %1 = arith.subf %cst, %0 : f32
    %c0_0 = arith.constant 0 : index
    %c0_1 = arith.constant 0 : index
    %2 = vector.load %arg2[%c0_0, %c0_1] : memref<64x4096xf32, #tpu.memory_space<vmem>>, vector<64x4096xf32>
    %3 = vector.broadcast %1 : f32 to vector<64x4096xf32>
    %4 = arith.mulf %2, %3 : vector<64x4096xf32>
    %c0_2 = arith.constant 0 : index
    %c0_3 = arith.constant 0 : index
    %5 = vector.load %arg3[%c0_2, %c0_3] : memref<64x4096xf32, #tpu.memory_space<vmem>>, vector<64x4096xf32>
    tpu.vector_store %arg3[%c0_2, %c0_3], %4 {strides = array<i32>} : memref<64x4096xf32, #tpu.memory_space<vmem>>, vector<64x4096xf32>,
    return
  }
  func.func @transform_0(%arg0: i32, %arg1: memref<1xf32, #tpu.memory_space<smem>>) -> (i32, i32) {
    %c0_i32 = arith.constant 0 : i32
    %c0_i32_0 = arith.constant 0 : i32
    return %arg0, %c0_i32 : i32, i32
  }
  func.func @transform_1(%arg0: i32, %arg1: memref<1xf32, #tpu.memory_space<smem>>) -> (i32, i32) {
    %c0_i32 = arith.constant 0 : i32
    %c0_i32_0 = arith.constant 0 : i32
    return %arg0, %c0_i32 : i32, i32
  }
}

</mosaic_0001>

<llo_original>
// kernel: tpu_custom_call.1
$region0: #{tpu_custom_call.1}
  #allocation0 [shape = 'u32[]', space=smem, size = 0x4, offset = 0x4, fixed_abs, tag = 'smem constant byte address 0x4 - core index']
  #allocation1 [shape = 'u32[144,128]{1,0:T(1,128)}', space=vmem, size = 0x12000, scoped, tag = 'internal scratch']
  #allocation2 [shape = 's32[1]{0}', space=sflag, size = 0x4, scoped, tag = 'scoped memory for tpu_custom_call.1']
  #allocation3 [shape = 'f32[1]{0:T(128)S(6)}', space=smem, size = 0x200, scoped, tag = 'prefetched SMEM operand 0']
  %s0 = inlined_call_operand.<no memory space> [shape: f32[1], index: 0, kind: input, shape index: {}]
  %s1 = inlined_call_operand.hbm [shape: f32[256,4096], index: 1, kind: input, shape index: {}, may-alias: {1,2}]
  %s2 = inlined_call_operand.hbm [shape: f32[256,4096], index: 2, kind: output, shape index: {}, may-alias: {1,2}]
  %s3 = sld [smem:[#allocation0]]
  $region41: #{tpu_custom_call.1} parent=0
    _
  %s5 = ssub.s32 1, %s3
  %s6 = scalar_select 0, %s5, %s3
  %7 = sst [smem:[#allocation3]] %s0
  $region1: #{tpu_custom_call.1} parent=0
    #allocation4 [shape = 'u8[2097152]{0}', space=vmem, size = 0x200000, scoped, tag = 'input window, operand 1']
    #allocation5 [shape = 's32[2]{0}', space=sflag, size = 0x8, scoped, tag = 'scoped memory for tpu_custom_call.1']
    #allocation6 [shape = 's32[2]{0}', space=sflag, size = 0x8, scoped, tag = 'scoped memory for tpu_custom_call.1']
    #allocation7 [shape = 'u8[2097152]{0}', space=vmem, size = 0x200000, scoped, tag = 'output window, operand 0']
    %8 = vsyncpa [#allocation5], 0
    %s9 = scalar_lea.sflag [#allocation5], 1
    %10 = vsyncpa %s9, 0
    %11 = vsyncpa [#allocation6], 0
    %s12 = scalar_lea.sflag [#allocation6], 1
    %13 = vsyncpa %s12, 0
    loop: start=0, step=1, limit=6
    $region2: #{tpu_custom_call.1} parent=1 // loop_pre_header
      _
    $region3: #{tpu_custom_call.1} parent=1 // loop_header
      %s15 = sphi 0, %s19
      %p16 = scmp.ge.s32.totalorder %s15, 6
      %s25 = sphi 0, %s27
      %s28 = sphi 0, %s25
      %s29 = sphi 0, %s28
      %s45 = sphi 0, %s29
      %s51 = sphi 0, %s53
      %s54 = sphi 0, %s51
      %s55 = sphi 0, %s54
      %s71 = sphi 0, %s55
    $region4: #{tpu_custom_call.1} parent=1 // loop_header_branch
      %18 = sbr.rel (%p16) target = $region8
    $region5: #{tpu_custom_call.1} parent=1 // loop_body
      %s20 = ssub.s32 %s15, 1
      %s21 = ssub.s32 %s15, 2
      %s22 = sadd.s32 %s15, 1
      %s23 = ssub.s32 %s15, %s22
      %p24 = scmp.eq.s32.totalorder %s23, 0
      %s26 = sadd.s32 %s25, 1
      %s27 = scalar_select %p24, %s25, %s26
      %p30 = pneg %p24
      %p31 = scmp.eq.s32.totalorder %s15, 3
      %p32 = por %p30, %p31
      %p33 = scmp.ne.s32.totalorder %s25, %s28
      %p34 = scmp.eq.s32.totalorder %s15, 0
      %p35 = por %p33, %p34
      %p36 = scmp.ne.s32.totalorder %s25, %s28
      %p37 = scmp.eq.s32.totalorder %s20, 3
      %p38 = por %p36, %p37
      %p39 = scmp.ne.s32.totalorder %s28, %s29
      %p40 = scmp.eq.s32.totalorder %s20, 0
      %p41 = por %p39, %p40
      %p42 = scmp.ne.s32.totalorder %s28, %s29
      %p43 = scmp.eq.s32.totalorder %s21, 3
      %p44 = por %p42, %p43
      %p46 = scmp.ne.s32.totalorder %s29, %s45
      %p47 = scmp.eq.s32.totalorder %s21, 0
      %p48 = por %p46, %p47
      %s49 = ssub.s32 %s15, %s22
      %p50 = scmp.eq.s32.totalorder %s49, 0
      %s52 = sadd.s32 %s51, 1
      %s53 = scalar_select %p50, %s51, %s52
      %p56 = pneg %p50
      %p57 = scmp.eq.s32.totalorder %s15, 3
      %p58 = por %p56, %p57
      %p59 = scmp.ne.s32.totalorder %s51, %s54
      %p60 = scmp.eq.s32.totalorder %s15, 0
      %p61 = por %p59, %p60
      %p62 = scmp.ne.s32.totalorder %s51, %s54
      %p63 = scmp.eq.s32.totalorder %s20, 3
      %p64 = por %p62, %p63
      %p65 = scmp.ne.s32.totalorder %s54, %s55
      %p66 = scmp.eq.s32.totalorder %s20, 0
      %p67 = por %p65, %p66
      %p68 = scmp.ne.s32.totalorder %s54, %s55
      %p69 = scmp.eq.s32.totalorder %s21, 3
      %p70 = por %p68, %p69
      %p72 = scmp.ne.s32.totalorder %s55, %s71
      %p73 = scmp.eq.s32.totalorder %s21, 0
      %p74 = por %p72, %p73
      %p75 = scmp.le.s32.totalorder 1, %s15
      %p76 = scmp.lt.s32.totalorder %s15, 5
      %p77 = pnand %p75, %p76
      %p78 = pneg %p77
      // Predicated region
      $region9: #{tpu_custom_call.1} parent=5 // pred_check
        _
      $region10: #{tpu_custom_call.1} parent=5 // pred_check_branch
        %80 = sbr.rel (%p77) target = $region12
      $region11: #{tpu_custom_call.1} parent=5 // pred_region
        %s81 = ssub.s32 %s15, 1
      $region12: #{tpu_custom_call.1} parent=5 // pred_fallthru
        _
      %p82 = scmp.lt.s32.totalorder %s15, 4
      // Predicated region
      $region13: #{tpu_custom_call.1} parent=5 // pred_check
        %p83 = pneg %p82
      $region14: #{tpu_custom_call.1} parent=5 // pred_check_branch
        %85 = sbr.rel (%p83) target = $region16
      $region15: #{tpu_custom_call.1} parent=5 // pred_region
        // Predicated region
        $region17: #{tpu_custom_call.1} parent=15 // pred_check
          %p86 = pneg %p35
        $region18: #{tpu_custom_call.1} parent=15 // pred_check_branch
          %88 = sbr.rel (%p86) target = $region20
        $region19: #{tpu_custom_call.1} parent=15 // pred_region
          %s89 = sand.u32 %s25, 1
          %s90 = scalar_lea.sflag [#allocation5], %s89
          %s91 = sand.u32 %s25, 1
          %s92 = smul.addr %s91, 2048
          %s93 = scalar_lea.vmem [#allocation4], %s92
          %s94 = smul.u32 8, %s15
          %s96 = ssub.s32 32768, 32768
          %97 = vsyncadd %s90, %s96
          %s98 = smul.addr %s94, 32
          %s99 = smul.addr %s98, 128
          %s100 = scalar_lea.hbm %s1, %s99
          %s101 = sshll.u32 %s93, 4
          %s102 = int_to_ptr.vmem [resolvable:$true] %s101
          %107 = dma.hbm_to_vmem [thread:$0]  %s100, 32768, %s102, %s90, 4096, 4096, 256
        $region20: #{tpu_custom_call.1} parent=15 // pred_fallthru
          _
      $region16: #{tpu_custom_call.1} parent=5 // pred_fallthru
        _
      %p108 = scmp.le.s32.totalorder 1, %s15
      %p109 = scmp.lt.s32.totalorder %s15, 5
      %p110 = pnand %p108, %p109
      %p111 = pneg %p110
      // Predicated region
      $region21: #{tpu_custom_call.1} parent=5 // pred_check
        _
      $region22: #{tpu_custom_call.1} parent=5 // pred_check_branch
        %113 = sbr.rel (%p110) target = $region24
      $region23: #{tpu_custom_call.1} parent=5 // pred_region
        %s114 = ssub.s32 %s15, 1
        %s115 = sand.u32 %s28, 1
        %s116 = scalar_lea.sflag [#allocation5], %s115
        %s117 = sand.u32 %s28, 1
        %s118 = smul.addr %s117, 2048
        %s119 = scalar_lea.vmem [#allocation4], %s118
        // Predicated region
        $region25: #{tpu_custom_call.1} parent=23 // pred_check
          %p120 = pneg %p41
        $region26: #{tpu_custom_call.1} parent=23 // pred_check_branch
          %122 = sbr.rel (%p120) target = $region28
        $region27: #{tpu_custom_call.1} parent=23 // pred_region
          %123 = dma.done %s116, 32768
        $region28: #{tpu_custom_call.1} parent=23 // pred_fallthru
          _
        %s124 = sand.u32 %s28, 1
        %s125 = scalar_lea.sflag [#allocation5], %s124
        %s126 = sand.u32 %s28, 1
        %s127 = smul.addr %s126, 2048
        %s128 = scalar_lea.vmem [#allocation4], %s127
        %p129 = pneg %p41
        %p130 = pneg %p38
        %p131 = pneg %p67
        %p132 = pneg %p64
        %s133 = sand.u32 %s54, 1
        %s134 = scalar_lea.sflag [#allocation6], %s133
        %s135 = sand.u32 %s54, 1
        %s136 = smul.addr %s135, 2048
        %s137 = scalar_lea.vmem [#allocation7], %s136
        %s138 = smul.u32 8, %s20
        %s139 = smul.u32 8, %s20
        %s140 = sld [smem:[#allocation3]]
        %s141 = ssub.f32 0.0, %s140
        %v142 = vld [vmem:[%s119] sm:$0xff]
        %v143 = vld [vmem:[%s119 + $0x8] sm:$0xff]
        %v144 = vld [vmem:[%s119 + $0x10] sm:$0xff]
        %v145 = vld [vmem:[%s119 + $0x18] sm:$0xff]
        %v146 = vld [vmem:[%s119 + $0x20] sm:$0xff]
        %v147 = vld [vmem:[%s119 + $0x28] sm:$0xff]
        %v148 = vld [vmem:[%s119 + $0x30] sm:$0xff]
        %v149 = vld [vmem:[%s119 + $0x38] sm:$0xff]
        %v150 = vld [vmem:[%s119 + $0x40] sm:$0xff]
        %v151 = vld [vmem:[%s119 + $0x48] sm:$0xff]
        %v152 = vld [vmem:[%s119 + $0x50] sm:$0xff]
        %v153 = vld [vmem:[%s119 + $0x58] sm:$0xff]
        %v154 = vld [vmem:[%s119 + $0x60] sm:$0xff]
        %v155 = vld [vmem:[%s119 + $0x68] sm:$0xff]
        %v156 = vld [vmem:[%s119 + $0x70] sm:$0xff]
        %v157 = vld [vmem:[%s119 + $0x78] sm:$0xff]
        %v158 = vld [vmem:[%s119 + $0x80] sm:$0xff]
        %v159 = vld [vmem:[%s119 + $0x88] sm:$0xff]
        %v160 = vld [vmem:[%s119 + $0x90] sm:$0xff]
        %v161 = vld [vmem:[%s119 + $0x98] sm:$0xff]
        %v162 = vld [vmem:[%s119 + $0xa0] sm:$0xff]
        %v163 = vld [vmem:[%s119 + $0xa8] sm:$0xff]
        %v164 = vld [vmem:[%s119 + $0xb0] sm:$0xff]
        %v165 = vld [vmem:[%s119 + $0xb8] sm:$0xff]
        %v166 = vld [vmem:[%s119 + $0xc0] sm:$0xff]
        %v167 = vld [vmem:[%s119 + $0xc8] sm:$0xff]
        %v168 = vld [vmem:[%s119 + $0xd0] sm:$0xff]
        %v169 = vld [vmem:[%s119 + $0xd8] sm:$0xff]
        %v170 = vld [vmem:[%s119 + $0xe0] sm:$0xff]
        %v171 = vld [vmem:[%s119 + $0xe8] sm:$0xff]
        %v172 = vld [vmem:[%s119 + $0xf0] sm:$0xff]
        %v173 = vld [vmem:[%s119 + $0xf8] sm:$0xff]
        %v174 = vld [vmem:[%s119 + $0x100] sm:$0xff]
        %v175 = vld [vmem:[%s119 + $0x108] sm:$0xff]
        %v176 = vld [vmem:[%s119 + $0x110] sm:$0xff]
        %v177 = vld [vmem:[%s119 + $0x118] sm:$0xff]
        %v178 = vld [vmem:[%s119 + $0x120] sm:$0xff]
        %v179 = vld [vmem:[%s119 + $0x128] sm:$0xff]
        %v180 = vld [vmem:[%s119 + $0x130] sm:$0xff]
        %v181 = vld [vmem:[%s119 + $0x138] sm:$0xff]
        %v182 = vld [vmem:[%s119 + $0x140] sm:$0xff]
        %v183 = vld [vmem:[%s119 + $0x148] sm:$0xff]
        %v184 = vld [vmem:[%s119 + $0x150] sm:$0xff]
        %v185 = vld [vmem:[%s119 + $0x158] sm:$0xff]
        %v186 = vld [vmem:[%s119 + $0x160] sm:$0xff]
        %v187 = vld [vmem:[%s119 + $0x168] sm:$0xff]
        %v188 = vld [vmem:[%s119 + $0x170] sm:$0xff]
        %v189 = vld [vmem:[%s119 + $0x178] sm:$0xff]
        %v190 = vld [vmem:[%s119 + $0x180] sm:$0xff]
        %v191 = vld [vmem:[%s119 + $0x188] sm:$0xff]
        %v192 = vld [vmem:[%s119 + $0x190] sm:$0xff]
        %v193 = vld [vmem:[%s119 + $0x198] sm:$0xff]
        %v194 = vld [vmem:[%s119 + $0x1a0] sm:$0xff]
        %v195 = vld [vmem:[%s119 + $0x1a8] sm:$0xff]
        %v196 = vld [vmem:[%s119 + $0x1b0] sm:$0xff]
        %v197 = vld [vmem:[%s119 + $0x1b8] sm:$0xff]
        %v198 = vld [vmem:[%s119 + $0x1c0] sm:$0xff]
        %v199 = vld [vmem:[%s119 + $0x1c8] sm:$0xff]
        %v200 = vld [vmem:[%s119 + $0x1d0] sm:$0xff]
        %v201 = vld [vmem:[%s119 + $0x1d8] sm:$0xff]
        %v202 = vld [vmem:[%s119 + $0x1e0] sm:$0xff]
        %v203 = vld [vmem:[%s119 + $0x1e8] sm:$0xff]
        %v204 = vld [vmem:[%s119 + $0x1f0] sm:$0xff]
        %v205 = vld [vmem:[%s119 + $0x1f8] sm:$0xff]
        %v206 = vld [vmem:[%s119 + $0x200] sm:$0xff]
        %v207 = vld [vmem:[%s119 + $0x208] sm:$0xff]
        %v208 = vld [vmem:[%s119 + $0x210] sm:$0xff]
        %v209 = vld [vmem:[%s119 + $0x218] sm:$0xff]
        %v210 = vld [vmem:[%s119 + $0x220] sm:$0xff]
        %v211 = vld [vmem:[%s119 + $0x228] sm:$0xff]
        %v212 = vld [vmem:[%s119 + $0x230] sm:$0xff]
        %v213 = vld [vmem:[%s119 + $0x238] sm:$0xff]
        %v214 = vld [vmem:[%s119 + $0x240] sm:$0xff]
        %v215 = vld [vmem:[%s119 + $0x248] sm:$0xff]
        %v216 = vld [vmem:[%s119 + $0x250] sm:$0xff]
        %v217 = vld [vmem:[%s119 + $0x258] sm:$0xff]
        %v218 = vld [vmem:[%s119 + $0x260] sm:$0xff]
        %v219 = vld [vmem:[%s119 + $0x268] sm:$0xff]
        %v220 = vld [vmem:[%s119 + $0x270] sm:$0xff]
        %v221 = vld [vmem:[%s119 + $0x278] sm:$0xff]
        %v222 = vld [vmem:[%s119 + $0x280] sm:$0xff]
        %v223 = vld [vmem:[%s119 + $0x288] sm:$0xff]
        %v224 = vld [vmem:[%s119 + $0x290] sm:$0xff]
        %v225 = vld [vmem:[%s119 + $0x298] sm:$0xff]
        %v226 = vld [vmem:[%s119 + $0x2a0] sm:$0xff]
        %v227 = vld [vmem:[%s119 + $0x2a8] sm:$0xff]
        %v228 = vld [vmem:[%s119 + $0x2b0] sm:$0xff]
        %v229 = vld [vmem:[%s119 + $0x2b8] sm:$0xff]
        %v230 = vld [vmem:[%s119 + $0x2c0] sm:$0xff]
        %v231 = vld [vmem:[%s119 + $0x2c8] sm:$0xff]
        %v232 = vld [vmem:[%s119 + $0x2d0] sm:$0xff]
        %v233 = vld [vmem:[%s119 + $0x2d8] sm:$0xff]
        %v234 = vld [vmem:[%s119 + $0x2e0] sm:$0xff]
        %v235 = vld [vmem:[%s119 + $0x2e8] sm:$0xff]
        %v236 = vld [vmem:[%s119 + $0x2f0] sm:$0xff]
        %v237 = vld [vmem:[%s119 + $0x2f8] sm:$0xff]
        %v238 = vld [vmem:[%s119 + $0x300] sm:$0xff]
        %v239 = vld [vmem:[%s119 + $0x308] sm:$0xff]
        %v240 = vld [vmem:[%s119 + $0x310] sm:$0xff]
        %v241 = vld [vmem:[%s119 + $0x318] sm:$0xff]
        %v242 = vld [vmem:[%s119 + $0x320] sm:$0xff]
        %v243 = vld [vmem:[%s119 + $0x328] sm:$0xff]
        %v244 = vld [vmem:[%s119 + $0x330] sm:$0xff]
        %v245 = vld [vmem:[%s119 + $0x338] sm:$0xff]
        %v246 = vld [vmem:[%s119 + $0x340] sm:$0xff]
        %v247 = vld [vmem:[%s119 + $0x348] sm:$0xff]
        %v248 = vld [vmem:[%s119 + $0x350] sm:$0xff]
        %v249 = vld [vmem:[%s119 + $0x358] sm:$0xff]
        %v250 = vld [vmem:[%s119 + $0x360] sm:$0xff]
        %v251 = vld [vmem:[%s119 + $0x368] sm:$0xff]
        %v252 = vld [vmem:[%s119 + $0x370] sm:$0xff]
        %v253 = vld [vmem:[%s119 + $0x378] sm:$0xff]
        %v254 = vld [vmem:[%s119 + $0x380] sm:$0xff]
        %v255 = vld [vmem:[%s119 + $0x388] sm:$0xff]
        %v256 = vld [vmem:[%s119 + $0x390] sm:$0xff]
        %v257 = vld [vmem:[%s119 + $0x398] sm:$0xff]
        %v258 = vld [vmem:[%s119 + $0x3a0] sm:$0xff]
        %v259 = vld [vmem:[%s119 + $0x3a8] sm:$0xff]
        %v260 = vld [vmem:[%s119 + $0x3b0] sm:$0xff]
        %v261 = vld [vmem:[%s119 + $0x3b8] sm:$0xff]
        %v262 = vld [vmem:[%s119 + $0x3c0] sm:$0xff]
        %v263 = vld [vmem:[%s119 + $0x3c8] sm:$0xff]
        %v264 = vld [vmem:[%s119 + $0x3d0] sm:$0xff]
        %v265 = vld [vmem:[%s119 + $0x3d8] sm:$0xff]
        %v266 = vld [vmem:[%s119 + $0x3e0] sm:$0xff]
        %v267 = vld [vmem:[%s119 + $0x3e8] sm:$0xff]
        %v268 = vld [vmem:[%s119 + $0x3f0] sm:$0xff]
        %v269 = vld [vmem:[%s119 + $0x3f8] sm:$0xff]
        %v270 = vld [vmem:[%s119 + $0x400] sm:$0xff]
        %v271 = vld [vmem:[%s119 + $0x408] sm:$0xff]
        %v272 = vld [vmem:[%s119 + $0x410] sm:$0xff]
        %v273 = vld [vmem:[%s119 + $0x418] sm:$0xff]
        %v274 = vld [vmem:[%s119 + $0x420] sm:$0xff]
        %v275 = vld [vmem:[%s119 + $0x428] sm:$0xff]
        %v276 = vld [vmem:[%s119 + $0x430] sm:$0xff]
        %v277 = vld [vmem:[%s119 + $0x438] sm:$0xff]
        %v278 = vld [vmem:[%s119 + $0x440] sm:$0xff]
        %v279 = vld [vmem:[%s119 + $0x448] sm:$0xff]
        %v280 = vld [vmem:[%s119 + $0x450] sm:$0xff]
        %v281 = vld [vmem:[%s119 + $0x458] sm:$0xff]
        %v282 = vld [vmem:[%s119 + $0x460] sm:$0xff]
        %v283 = vld [vmem:[%s119 + $0x468] sm:$0xff]
        %v284 = vld [vmem:[%s119 + $0x470] sm:$0xff]
        %v285 = vld [vmem:[%s119 + $0x478] sm:$0xff]
        %v286 = vld [vmem:[%s119 + $0x480] sm:$0xff]
        %v287 = vld [vmem:[%s119 + $0x488] sm:$0xff]
        %v288 = vld [vmem:[%s119 + $0x490] sm:$0xff]
        %v289 = vld [vmem:[%s119 + $0x498] sm:$0xff]
        %v290 = vld [vmem:[%s119 + $0x4a0] sm:$0xff]
        %v291 = vld [vmem:[%s119 + $0x4a8] sm:$0xff]
        %v292 = vld [vmem:[%s119 + $0x4b0] sm:$0xff]
        %v293 = vld [vmem:[%s119 + $0x4b8] sm:$0xff]
        %v294 = vld [vmem:[%s119 + $0x4c0] sm:$0xff]
        %v295 = vld [vmem:[%s119 + $0x4c8] sm:$0xff]
        %v296 = vld [vmem:[%s119 + $0x4d0] sm:$0xff]
        %v297 = vld [vmem:[%s119 + $0x4d8] sm:$0xff]
        %v298 = vld [vmem:[%s119 + $0x4e0] sm:$0xff]
        %v299 = vld [vmem:[%s119 + $0x4e8] sm:$0xff]
        %v300 = vld [vmem:[%s119 + $0x4f0] sm:$0xff]
        %v301 = vld [vmem:[%s119 + $0x4f8] sm:$0xff]
        %v302 = vld [vmem:[%s119 + $0x500] sm:$0xff]
        %v303 = vld [vmem:[%s119 + $0x508] sm:$0xff]
        %v304 = vld [vmem:[%s119 + $0x510] sm:$0xff]
        %v305 = vld [vmem:[%s119 + $0x518] sm:$0xff]
        %v306 = vld [vmem:[%s119 + $0x520] sm:$0xff]
        %v307 = vld [vmem:[%s119 + $0x528] sm:$0xff]
        %v308 = vld [vmem:[%s119 + $0x530] sm:$0xff]
        %v309 = vld [vmem:[%s119 + $0x538] sm:$0xff]
        %v310 = vld [vmem:[%s119 + $0x540] sm:$0xff]
        %v311 = vld [vmem:[%s119 + $0x548] sm:$0xff]
        %v312 = vld [vmem:[%s119 + $0x550] sm:$0xff]
        %v313 = vld [vmem:[%s119 + $0x558] sm:$0xff]
        %v314 = vld [vmem:[%s119 + $0x560] sm:$0xff]
        %v315 = vld [vmem:[%s119 + $0x568] sm:$0xff]
        %v316 = vld [vmem:[%s119 + $0x570] sm:$0xff]
        %v317 = vld [vmem:[%s119 + $0x578] sm:$0xff]
        %v318 = vld [vmem:[%s119 + $0x580] sm:$0xff]
        %v319 = vld [vmem:[%s119 + $0x588] sm:$0xff]
        %v320 = vld [vmem:[%s119 + $0x590] sm:$0xff]
        %v321 = vld [vmem:[%s119 + $0x598] sm:$0xff]
        %v322 = vld [vmem:[%s119 + $0x5a0] sm:$0xff]
        %v323 = vld [vmem:[%s119 + $0x5a8] sm:$0xff]
        %v324 = vld [vmem:[%s119 + $0x5b0] sm:$0xff]
        %v325 = vld [vmem:[%s119 + $0x5b8] sm:$0xff]
        %v326 = vld [vmem:[%s119 + $0x5c0] sm:$0xff]
        %v327 = vld [vmem:[%s119 + $0x5c8] sm:$0xff]
        %v328 = vld [vmem:[%s119 + $0x5d0] sm:$0xff]
        %v329 = vld [vmem:[%s119 + $0x5d8] sm:$0xff]
        %v330 = vld [vmem:[%s119 + $0x5e0] sm:$0xff]
        %v331 = vld [vmem:[%s119 + $0x5e8] sm:$0xff]
        %v332 = vld [vmem:[%s119 + $0x5f0] sm:$0xff]
        %v333 = vld [vmem:[%s119 + $0x5f8] sm:$0xff]
        %v334 = vld [vmem:[%s119 + $0x600] sm:$0xff]
        %v335 = vld [vmem:[%s119 + $0x608] sm:$0xff]
        %v336 = vld [vmem:[%s119 + $0x610] sm:$0xff]
        %v337 = vld [vmem:[%s119 + $0x618] sm:$0xff]
        %v338 = vld [vmem:[%s119 + $0x620] sm:$0xff]
        %v339 = vld [vmem:[%s119 + $0x628] sm:$0xff]
        %v340 = vld [vmem:[%s119 + $0x630] sm:$0xff]
        %v341 = vld [vmem:[%s119 + $0x638] sm:$0xff]
        %v342 = vld [vmem:[%s119 + $0x640] sm:$0xff]
        %v343 = vld [vmem:[%s119 + $0x648] sm:$0xff]
        %v344 = vld [vmem:[%s119 + $0x650] sm:$0xff]
        %v345 = vld [vmem:[%s119 + $0x658] sm:$0xff]
        %v346 = vld [vmem:[%s119 + $0x660] sm:$0xff]
        %v347 = vld [vmem:[%s119 + $0x668] sm:$0xff]
        %v348 = vld [vmem:[%s119 + $0x670] sm:$0xff]
        %v349 = vld [vmem:[%s119 + $0x678] sm:$0xff]
        %v350 = vld [vmem:[%s119 + $0x680] sm:$0xff]
        %v351 = vld [vmem:[%s119 + $0x688] sm:$0xff]
        %v352 = vld [vmem:[%s119 + $0x690] sm:$0xff]
        %v353 = vld [vmem:[%s119 + $0x698] sm:$0xff]
        %v354 = vld [vmem:[%s119 + $0x6a0] sm:$0xff]
        %v355 = vld [vmem:[%s119 + $0x6a8] sm:$0xff]
        %v356 = vld [vmem:[%s119 + $0x6b0] sm:$0xff]
        %v357 = vld [vmem:[%s119 + $0x6b8] sm:$0xff]
        %v358 = vld [vmem:[%s119 + $0x6c0] sm:$0xff]
        %v359 = vld [vmem:[%s119 + $0x6c8] sm:$0xff]
        %v360 = vld [vmem:[%s119 + $0x6d0] sm:$0xff]
        %v361 = vld [vmem:[%s119 + $0x6d8] sm:$0xff]
        %v362 = vld [vmem:[%s119 + $0x6e0] sm:$0xff]
        %v363 = vld [vmem:[%s119 + $0x6e8] sm:$0xff]
        %v364 = vld [vmem:[%s119 + $0x6f0] sm:$0xff]
        %v365 = vld [vmem:[%s119 + $0x6f8] sm:$0xff]
        %v366 = vld [vmem:[%s119 + $0x700] sm:$0xff]
        %v367 = vld [vmem:[%s119 + $0x708] sm:$0xff]
        %v368 = vld [vmem:[%s119 + $0x710] sm:$0xff]
        %v369 = vld [vmem:[%s119 + $0x718] sm:$0xff]
        %v370 = vld [vmem:[%s119 + $0x720] sm:$0xff]
        %v371 = vld [vmem:[%s119 + $0x728] sm:$0xff]
        %v372 = vld [vmem:[%s119 + $0x730] sm:$0xff]
        %v373 = vld [vmem:[%s119 + $0x738] sm:$0xff]
        %v374 = vld [vmem:[%s119 + $0x740] sm:$0xff]
        %v375 = vld [vmem:[%s119 + $0x748] sm:$0xff]
        %v376 = vld [vmem:[%s119 + $0x750] sm:$0xff]
        %v377 = vld [vmem:[%s119 + $0x758] sm:$0xff]
        %v378 = vld [vmem:[%s119 + $0x760] sm:$0xff]
        %v379 = vld [vmem:[%s119 + $0x768] sm:$0xff]
        %v380 = vld [vmem:[%s119 + $0x770] sm:$0xff]
        %v381 = vld [vmem:[%s119 + $0x778] sm:$0xff]
        %v382 = vld [vmem:[%s119 + $0x780] sm:$0xff]
        %v383 = vld [vmem:[%s119 + $0x788] sm:$0xff]
        %v384 = vld [vmem:[%s119 + $0x790] sm:$0xff]
        %v385 = vld [vmem:[%s119 + $0x798] sm:$0xff]
        %v386 = vld [vmem:[%s119 + $0x7a0] sm:$0xff]
        %v387 = vld [vmem:[%s119 + $0x7a8] sm:$0xff]
        %v388 = vld [vmem:[%s119 + $0x7b0] sm:$0xff]
        %v389 = vld [vmem:[%s119 + $0x7b8] sm:$0xff]
        %v390 = vld [vmem:[%s119 + $0x7c0] sm:$0xff]
        %v391 = vld [vmem:[%s119 + $0x7c8] sm:$0xff]
        %v392 = vld [vmem:[%s119 + $0x7d0] sm:$0xff]
        %v393 = vld [vmem:[%s119 + $0x7d8] sm:$0xff]
        %v394 = vld [vmem:[%s119 + $0x7e0] sm:$0xff]
        %v395 = vld [vmem:[%s119 + $0x7e8] sm:$0xff]
        %v396 = vld [vmem:[%s119 + $0x7f0] sm:$0xff]
        %v397 = vld [vmem:[%s119 + $0x7f8] sm:$0xff]
        %v398 = vstv %s141
        %v399 = vmul.f32 %v142, %v398
        %v400 = vmul.f32 %v143, %v398
        %v401 = vmul.f32 %v144, %v398
        %v402 = vmul.f32 %v145, %v398
        %v403 = vmul.f32 %v146, %v398
        %v404 = vmul.f32 %v147, %v398
        %v405 = vmul.f32 %v148, %v398
        %v406 = vmul.f32 %v149, %v398
        %v407 = vmul.f32 %v150, %v398
        %v408 = vmul.f32 %v151, %v398
        %v409 = vmul.f32 %v152, %v398
        %v410 = vmul.f32 %v153, %v398
        %v411 = vmul.f32 %v154, %v398
        %v412 = vmul.f32 %v155, %v398
        %v413 = vmul.f32 %v156, %v398
        %v414 = vmul.f32 %v157, %v398
        %v415 = vmul.f32 %v158, %v398
        %v416 = vmul.f32 %v159, %v398
        %v417 = vmul.f32 %v160, %v398
        %v418 = vmul.f32 %v161, %v398
        %v419 = vmul.f32 %v162, %v398
        %v420 = vmul.f32 %v163, %v398
        %v421 = vmul.f32 %v164, %v398
        %v422 = vmul.f32 %v165, %v398
        %v423 = vmul.f32 %v166, %v398
        %v424 = vmul.f32 %v167, %v398
        %v425 = vmul.f32 %v168, %v398
        %v426 = vmul.f32 %v169, %v398
        %v427 = vmul.f32 %v170, %v398
        %v428 = vmul.f32 %v171, %v398
        %v429 = vmul.f32 %v172, %v398
        %v430 = vmul.f32 %v173, %v398
        %v431 = vmul.f32 %v174, %v398
        %v432 = vmul.f32 %v175, %v398
        %v433 = vmul.f32 %v176, %v398
        %v434 = vmul.f32 %v177, %v398
        %v435 = vmul.f32 %v178, %v398
        %v436 = vmul.f32 %v179, %v398
        %v437 = vmul.f32 %v180, %v398
        %v438 = vmul.f32 %v181, %v398
        %v439 = vmul.f32 %v182, %v398
        %v440 = vmul.f32 %v183, %v398
        %v441 = vmul.f32 %v184, %v398
        %v442 = vmul.f32 %v185, %v398
        %v443 = vmul.f32 %v186, %v398
        %v444 = vmul.f32 %v187, %v398
        %v445 = vmul.f32 %v188, %v398
        %v446 = vmul.f32 %v189, %v398
        %v447 = vmul.f32 %v190, %v398
        %v448 = vmul.f32 %v191, %v398
        %v449 = vmul.f32 %v192, %v398
        %v450 = vmul.f32 %v193, %v398
        %v451 = vmul.f32 %v194, %v398
        %v452 = vmul.f32 %v195, %v398
        %v453 = vmul.f32 %v196, %v398
        %v454 = vmul.f32 %v197, %v398
        %v455 = vmul.f32 %v198, %v398
        %v456 = vmul.f32 %v199, %v398
        %v457 = vmul.f32 %v200, %v398
        %v458 = vmul.f32 %v201, %v398
        %v459 = vmul.f32 %v202, %v398
        %v460 = vmul.f32 %v203, %v398
        %v461 = vmul.f32 %v204, %v398
        %v462 = vmul.f32 %v205, %v398
        %v463 = vmul.f32 %v206, %v398
        %v464 = vmul.f32 %v207, %v398
        %v465 = vmul.f32 %v208, %v398
        %v466 = vmul.f32 %v209, %v398
        %v467 = vmul.f32 %v210, %v398
        %v468 = vmul.f32 %v211, %v398
        %v469 = vmul.f32 %v212, %v398
        %v470 = vmul.f32 %v213, %v398
        %v471 = vmul.f32 %v214, %v398
        %v472 = vmul.f32 %v215, %v398
        %v473 = vmul.f32 %v216, %v398
        %v474 = vmul.f32 %v217, %v398
        %v475 = vmul.f32 %v218, %v398
        %v476 = vmul.f32 %v219, %v398
        %v477 = vmul.f32 %v220, %v398
        %v478 = vmul.f32 %v221, %v398
        %v479 = vmul.f32 %v222, %v398
        %v480 = vmul.f32 %v223, %v398
        %v481 = vmul.f32 %v224, %v398
        %v482 = vmul.f32 %v225, %v398
        %v483 = vmul.f32 %v226, %v398
        %v484 = vmul.f32 %v227, %v398
        %v485 = vmul.f32 %v228, %v398
        %v486 = vmul.f32 %v229, %v398
        %v487 = vmul.f32 %v230, %v398
        %v488 = vmul.f32 %v231, %v398
        %v489 = vmul.f32 %v232, %v398
        %v490 = vmul.f32 %v233, %v398
        %v491 = vmul.f32 %v234, %v398
        %v492 = vmul.f32 %v235, %v398
        %v493 = vmul.f32 %v236, %v398
        %v494 = vmul.f32 %v237, %v398
        %v495 = vmul.f32 %v238, %v398
        %v496 = vmul.f32 %v239, %v398
        %v497 = vmul.f32 %v240, %v398
        %v498 = vmul.f32 %v241, %v398
        %v499 = vmul.f32 %v242, %v398
        %v500 = vmul.f32 %v243, %v398
        %v501 = vmul.f32 %v244, %v398
        %v502 = vmul.f32 %v245, %v398
        %v503 = vmul.f32 %v246, %v398
        %v504 = vmul.f32 %v247, %v398
        %v505 = vmul.f32 %v248, %v398
        %v506 = vmul.f32 %v249, %v398
        %v507 = vmul.f32 %v250, %v398
        %v508 = vmul.f32 %v251, %v398
        %v509 = vmul.f32 %v252, %v398
        %v510 = vmul.f32 %v253, %v398
        %v511 = vmul.f32 %v254, %v398
        %v512 = vmul.f32 %v255, %v398
        %v513 = vmul.f32 %v256, %v398
        %v514 = vmul.f32 %v257, %v398
        %v515 = vmul.f32 %v258, %v398
        %v516 = vmul.f32 %v259, %v398
        %v517 = vmul.f32 %v260, %v398
        %v518 = vmul.f32 %v261, %v398
        %v519 = vmul.f32 %v262, %v398
        %v520 = vmul.f32 %v263, %v398
        %v521 = vmul.f32 %v264, %v398
        %v522 = vmul.f32 %v265, %v398
        %v523 = vmul.f32 %v266, %v398
        %v524 = vmul.f32 %v267, %v398
        %v525 = vmul.f32 %v268, %v398
        %v526 = vmul.f32 %v269, %v398
        %v527 = vmul.f32 %v270, %v398
        %v528 = vmul.f32 %v271, %v398
        %v529 = vmul.f32 %v272, %v398
        %v530 = vmul.f32 %v273, %v398
        %v531 = vmul.f32 %v274, %v398
        %v532 = vmul.f32 %v275, %v398
        %v533 = vmul.f32 %v276, %v398
        %v534 = vmul.f32 %v277, %v398
        %v535 = vmul.f32 %v278, %v398
        %v536 = vmul.f32 %v279, %v398
        %v537 = vmul.f32 %v280, %v398
        %v538 = vmul.f32 %v281, %v398
        %v539 = vmul.f32 %v282, %v398
        %v540 = vmul.f32 %v283, %v398
        %v541 = vmul.f32 %v284, %v398
        %v542 = vmul.f32 %v285, %v398
        %v543 = vmul.f32 %v286, %v398
        %v544 = vmul.f32 %v287, %v398
        %v545 = vmul.f32 %v288, %v398
        %v546 = vmul.f32 %v289, %v398
        %v547 = vmul.f32 %v290, %v398
        %v548 = vmul.f32 %v291, %v398
        %v549 = vmul.f32 %v292, %v398
        %v550 = vmul.f32 %v293, %v398
        %v551 = vmul.f32 %v294, %v398
        %v552 = vmul.f32 %v295, %v398
        %v553 = vmul.f32 %v296, %v398
        %v554 = vmul.f32 %v297, %v398
        %v555 = vmul.f32 %v298, %v398
        %v556 = vmul.f32 %v299, %v398
        %v557 = vmul.f32 %v300, %v398
        %v558 = vmul.f32 %v301, %v398
        %v559 = vmul.f32 %v302, %v398
        %v560 = vmul.f32 %v303, %v398
        %v561 = vmul.f32 %v304, %v398
        %v562 = vmul.f32 %v305, %v398
        %v563 = vmul.f32 %v306, %v398
        %v564 = vmul.f32 %v307, %v398
        %v565 = vmul.f32 %v308, %v398
        %v566 = vmul.f32 %v309, %v398
        %v567 = vmul.f32 %v310, %v398
        %v568 = vmul.f32 %v311, %v398
        %v569 = vmul.f32 %v312, %v398
        %v570 = vmul.f32 %v313, %v398
        %v571 = vmul.f32 %v314, %v398
        %v572 = vmul.f32 %v315, %v398
        %v573 = vmul.f32 %v316, %v398
        %v574 = vmul.f32 %v317, %v398
        %v575 = vmul.f32 %v318, %v398
        %v576 = vmul.f32 %v319, %v398
        %v577 = vmul.f32 %v320, %v398
        %v578 = vmul.f32 %v321, %v398
        %v579 = vmul.f32 %v322, %v398
        %v580 = vmul.f32 %v323, %v398
        %v581 = vmul.f32 %v324, %v398
        %v582 = vmul.f32 %v325, %v398
        %v583 = vmul.f32 %v326, %v398
        %v584 = vmul.f32 %v327, %v398
        %v585 = vmul.f32 %v328, %v398
        %v586 = vmul.f32 %v329, %v398
        %v587 = vmul.f32 %v330, %v398
        %v588 = vmul.f32 %v331, %v398
        %v589 = vmul.f32 %v332, %v398
        %v590 = vmul.f32 %v333, %v398
        %v591 = vmul.f32 %v334, %v398
        %v592 = vmul.f32 %v335, %v398
        %v593 = vmul.f32 %v336, %v398
        %v594 = vmul.f32 %v337, %v398
        %v595 = vmul.f32 %v338, %v398
        %v596 = vmul.f32 %v339, %v398
        %v597 = vmul.f32 %v340, %v398
        %v598 = vmul.f32 %v341, %v398
        %v599 = vmul.f32 %v342, %v398
        %v600 = vmul.f32 %v343, %v398
        %v601 = vmul.f32 %v344, %v398
        %v602 = vmul.f32 %v345, %v398
        %v603 = vmul.f32 %v346, %v398
        %v604 = vmul.f32 %v347, %v398
        %v605 = vmul.f32 %v348, %v398
        %v606 = vmul.f32 %v349, %v398
        %v607 = vmul.f32 %v350, %v398
        %v608 = vmul.f32 %v351, %v398
        %v609 = vmul.f32 %v352, %v398
        %v610 = vmul.f32 %v353, %v398
        %v611 = vmul.f32 %v354, %v398
        %v612 = vmul.f32 %v355, %v398
        %v613 = vmul.f32 %v356, %v398
        %v614 = vmul.f32 %v357, %v398
        %v615 = vmul.f32 %v358, %v398
        %v616 = vmul.f32 %v359, %v398
        %v617 = vmul.f32 %v360, %v398
        %v618 = vmul.f32 %v361, %v398
        %v619 = vmul.f32 %v362, %v398
        %v620 = vmul.f32 %v363, %v398
        %v621 = vmul.f32 %v364, %v398
        %v622 = vmul.f32 %v365, %v398
        %v623 = vmul.f32 %v366, %v398
        %v624 = vmul.f32 %v367, %v398
        %v625 = vmul.f32 %v368, %v398
        %v626 = vmul.f32 %v369, %v398
        %v627 = vmul.f32 %v370, %v398
        %v628 = vmul.f32 %v371, %v398
        %v629 = vmul.f32 %v372, %v398
        %v630 = vmul.f32 %v373, %v398
        %v631 = vmul.f32 %v374, %v398
        %v632 = vmul.f32 %v375, %v398
        %v633 = vmul.f32 %v376, %v398
        %v634 = vmul.f32 %v377, %v398
        %v635 = vmul.f32 %v378, %v398
        %v636 = vmul.f32 %v379, %v398
        %v637 = vmul.f32 %v380, %v398
        %v638 = vmul.f32 %v381, %v398
        %v639 = vmul.f32 %v382, %v398
        %v640 = vmul.f32 %v383, %v398
        %v641 = vmul.f32 %v384, %v398
        %v642 = vmul.f32 %v385, %v398
        %v643 = vmul.f32 %v386, %v398
        %v644 = vmul.f32 %v387, %v398
        %v645 = vmul.f32 %v388, %v398
        %v646 = vmul.f32 %v389, %v398
        %v647 = vmul.f32 %v390, %v398
        %v648 = vmul.f32 %v391, %v398
        %v649 = vmul.f32 %v392, %v398
        %v650 = vmul.f32 %v393, %v398
        %v651 = vmul.f32 %v394, %v398
        %v652 = vmul.f32 %v395, %v398
        %v653 = vmul.f32 %v396, %v398
        %v654 = vmul.f32 %v397, %v398
        %655 = vst [vmem:[%s137] sm:$0xff] %v399
        %656 = vst [vmem:[%s137 + $0x8] sm:$0xff] %v400
        %657 = vst [vmem:[%s137 + $0x10] sm:$0xff] %v401
        %658 = vst [vmem:[%s137 + $0x18] sm:$0xff] %v402
        %659 = vst [vmem:[%s137 + $0x20] sm:$0xff] %v403
        %660 = vst [vmem:[%s137 + $0x28] sm:$0xff] %v404
        %661 = vst [vmem:[%s137 + $0x30] sm:$0xff] %v405
        %662 = vst [vmem:[%s137 + $0x38] sm:$0xff] %v406
        %663 = vst [vmem:[%s137 + $0x40] sm:$0xff] %v407
        %664 = vst [vmem:[%s137 + $0x48] sm:$0xff] %v408
        %665 = vst [vmem:[%s137 + $0x50] sm:$0xff] %v409
        %666 = vst [vmem:[%s137 + $0x58] sm:$0xff] %v410
        %667 = vst [vmem:[%s137 + $0x60] sm:$0xff] %v411
        %668 = vst [vmem:[%s137 + $0x68] sm:$0xff] %v412
        %669 = vst [vmem:[%s137 + $0x70] sm:$0xff] %v413
        %670 = vst [vmem:[%s137 + $0x78] sm:$0xff] %v414
        %671 = vst [vmem:[%s137 + $0x80] sm:$0xff] %v415
        %672 = vst [vmem:[%s137 + $0x88] sm:$0xff] %v416
        %673 = vst [vmem:[%s137 + $0x90] sm:$0xff] %v417
        %674 = vst [vmem:[%s137 + $0x98] sm:$0xff] %v418
        %675 = vst [vmem:[%s137 + $0xa0] sm:$0xff] %v419
        %676 = vst [vmem:[%s137 + $0xa8] sm:$0xff] %v420
        %677 = vst [vmem:[%s137 + $0xb0] sm:$0xff] %v421
        %678 = vst [vmem:[%s137 + $0xb8] sm:$0xff] %v422
        %679 = vst [vmem:[%s137 + $0xc0] sm:$0xff] %v423
        %680 = vst [vmem:[%s137 + $0xc8] sm:$0xff] %v424
        %681 = vst [vmem:[%s137 + $0xd0] sm:$0xff] %v425
        %682 = vst [vmem:[%s137 + $0xd8] sm:$0xff] %v426
        %683 = vst [vmem:[%s137 + $0xe0] sm:$0xff] %v427
        %684 = vst [vmem:[%s137 + $0xe8] sm:$0xff] %v428
        %685 = vst [vmem:[%s137 + $0xf0] sm:$0xff] %v429
        %686 = vst [vmem:[%s137 + $0xf8] sm:$0xff] %v430
        %687 = vst [vmem:[%s137 + $0x100] sm:$0xff] %v431
        %688 = vst [vmem:[%s137 + $0x108] sm:$0xff] %v432
        %689 = vst [vmem:[%s137 + $0x110] sm:$0xff] %v433
        %690 = vst [vmem:[%s137 + $0x118] sm:$0xff] %v434
        %691 = vst [vmem:[%s137 + $0x120] sm:$0xff] %v435
        %692 = vst [vmem:[%s137 + $0x128] sm:$0xff] %v436
        %693 = vst [vmem:[%s137 + $0x130] sm:$0xff] %v437
        %694 = vst [vmem:[%s137 + $0x138] sm:$0xff] %v438
        %695 = vst [vmem:[%s137 + $0x140] sm:$0xff] %v439
        %696 = vst [vmem:[%s137 + $0x148] sm:$0xff] %v440
        %697 = vst [vmem:[%s137 + $0x150] sm:$0xff] %v441
        %698 = vst [vmem:[%s137 + $0x158] sm:$0xff] %v442
        %699 = vst [vmem:[%s137 + $0x160] sm:$0xff] %v443
        %700 = vst [vmem:[%s137 + $0x168] sm:$0xff] %v444
        %701 = vst [vmem:[%s137 + $0x170] sm:$0xff] %v445
        %702 = vst [vmem:[%s137 + $0x178] sm:$0xff] %v446
        %703 = vst [vmem:[%s137 + $0x180] sm:$0xff] %v447
        %704 = vst [vmem:[%s137 + $0x188] sm:$0xff] %v448
        %705 = vst [vmem:[%s137 + $0x190] sm:$0xff] %v449
        %706 = vst [vmem:[%s137 + $0x198] sm:$0xff] %v450
        %707 = vst [vmem:[%s137 + $0x1a0] sm:$0xff] %v451
        %708 = vst [vmem:[%s137 + $0x1a8] sm:$0xff] %v452
        %709 = vst [vmem:[%s137 + $0x1b0] sm:$0xff] %v453
        %710 = vst [vmem:[%s137 + $0x1b8] sm:$0xff] %v454
        %711 = vst [vmem:[%s137 + $0x1c0] sm:$0xff] %v455
        %712 = vst [vmem:[%s137 + $0x1c8] sm:$0xff] %v456
        %713 = vst [vmem:[%s137 + $0x1d0] sm:$0xff] %v457
        %714 = vst [vmem:[%s137 + $0x1d8] sm:$0xff] %v458
        %715 = vst [vmem:[%s137 + $0x1e0] sm:$0xff] %v459
        %716 = vst [vmem:[%s137 + $0x1e8] sm:$0xff] %v460
        %717 = vst [vmem:[%s137 + $0x1f0] sm:$0xff] %v461
        %718 = vst [vmem:[%s137 + $0x1f8] sm:$0xff] %v462
        %719 = vst [vmem:[%s137 + $0x200] sm:$0xff] %v463
        %720 = vst [vmem:[%s137 + $0x208] sm:$0xff] %v464
        %721 = vst [vmem:[%s137 + $0x210] sm:$0xff] %v465
        %722 = vst [vmem:[%s137 + $0x218] sm:$0xff] %v466
        %723 = vst [vmem:[%s137 + $0x220] sm:$0xff] %v467
        %724 = vst [vmem:[%s137 + $0x228] sm:$0xff] %v468
        %725 = vst [vmem:[%s137 + $0x230] sm:$0xff] %v469
        %726 = vst [vmem:[%s137 + $0x238] sm:$0xff] %v470
        %727 = vst [vmem:[%s137 + $0x240] sm:$0xff] %v471
        %728 = vst [vmem:[%s137 + $0x248] sm:$0xff] %v472
        %729 = vst [vmem:[%s137 + $0x250] sm:$0xff] %v473
        %730 = vst [vmem:[%s137 + $0x258] sm:$0xff] %v474
        %731 = vst [vmem:[%s137 + $0x260] sm:$0xff] %v475
        %732 = vst [vmem:[%s137 + $0x268] sm:$0xff] %v476
        %733 = vst [vmem:[%s137 + $0x270] sm:$0xff] %v477
        %734 = vst [vmem:[%s137 + $0x278] sm:$0xff] %v478
        %735 = vst [vmem:[%s137 + $0x280] sm:$0xff] %v479
        %736 = vst [vmem:[%s137 + $0x288] sm:$0xff] %v480
        %737 = vst [vmem:[%s137 + $0x290] sm:$0xff] %v481
        %738 = vst [vmem:[%s137 + $0x298] sm:$0xff] %v482
        %739 = vst [vmem:[%s137 + $0x2a0] sm:$0xff] %v483
        %740 = vst [vmem:[%s137 + $0x2a8] sm:$0xff] %v484
        %741 = vst [vmem:[%s137 + $0x2b0] sm:$0xff] %v485
        %742 = vst [vmem:[%s137 + $0x2b8] sm:$0xff] %v486
        %743 = vst [vmem:[%s137 + $0x2c0] sm:$0xff] %v487
        %744 = vst [vmem:[%s137 + $0x2c8] sm:$0xff] %v488
        %745 = vst [vmem:[%s137 + $0x2d0] sm:$0xff] %v489
        %746 = vst [vmem:[%s137 + $0x2d8] sm:$0xff] %v490
        %747 = vst [vmem:[%s137 + $0x2e0] sm:$0xff] %v491
        %748 = vst [vmem:[%s137 + $0x2e8] sm:$0xff] %v492
        %749 = vst [vmem:[%s137 + $0x2f0] sm:$0xff] %v493
        %750 = vst [vmem:[%s137 + $0x2f8] sm:$0xff] %v494
        %751 = vst [vmem:[%s137 + $0x300] sm:$0xff] %v495
        %752 = vst [vmem:[%s137 + $0x308] sm:$0xff] %v496
        %753 = vst [vmem:[%s137 + $0x310] sm:$0xff] %v497
        %754 = vst [vmem:[%s137 + $0x318] sm:$0xff] %v498
        %755 = vst [vmem:[%s137 + $0x320] sm:$0xff] %v499
        %756 = vst [vmem:[%s137 + $0x328] sm:$0xff] %v500
        %757 = vst [vmem:[%s137 + $0x330] sm:$0xff] %v501
        %758 = vst [vmem:[%s137 + $0x338] sm:$0xff] %v502
        %759 = vst [vmem:[%s137 + $0x340] sm:$0xff] %v503
        %760 = vst [vmem:[%s137 + $0x348] sm:$0xff] %v504
        %761 = vst [vmem:[%s137 + $0x350] sm:$0xff] %v505
        %762 = vst [vmem:[%s137 + $0x358] sm:$0xff] %v506
        %763 = vst [vmem:[%s137 + $0x360] sm:$0xff] %v507
        %764 = vst [vmem:[%s137 + $0x368] sm:$0xff] %v508
        %765 = vst [vmem:[%s137 + $0x370] sm:$0xff] %v509
        %766 = vst [vmem:[%s137 + $0x378] sm:$0xff] %v510
        %767 = vst [vmem:[%s137 + $0x380] sm:$0xff] %v511
        %768 = vst [vmem:[%s137 + $0x388] sm:$0xff] %v512
        %769 = vst [vmem:[%s137 + $0x390] sm:$0xff] %v513
        %770 = vst [vmem:[%s137 + $0x398] sm:$0xff] %v514
        %771 = vst [vmem:[%s137 + $0x3a0] sm:$0xff] %v515
        %772 = vst [vmem:[%s137 + $0x3a8] sm:$0xff] %v516
        %773 = vst [vmem:[%s137 + $0x3b0] sm:$0xff] %v517
        %774 = vst [vmem:[%s137 + $0x3b8] sm:$0xff] %v518
        %775 = vst [vmem:[%s137 + $0x3c0] sm:$0xff] %v519
        %776 = vst [vmem:[%s137 + $0x3c8] sm:$0xff] %v520
        %777 = vst [vmem:[%s137 + $0x3d0] sm:$0xff] %v521
        %778 = vst [vmem:[%s137 + $0x3d8] sm:$0xff] %v522
        %779 = vst [vmem:[%s137 + $0x3e0] sm:$0xff] %v523
        %780 = vst [vmem:[%s137 + $0x3e8] sm:$0xff] %v524
        %781 = vst [vmem:[%s137 + $0x3f0] sm:$0xff] %v525
        %782 = vst [vmem:[%s137 + $0x3f8] sm:$0xff] %v526
        %783 = vst [vmem:[%s137 + $0x400] sm:$0xff] %v527
        %784 = vst [vmem:[%s137 + $0x408] sm:$0xff] %v528
        %785 = vst [vmem:[%s137 + $0x410] sm:$0xff] %v529
        %786 = vst [vmem:[%s137 + $0x418] sm:$0xff] %v530
        %787 = vst [vmem:[%s137 + $0x420] sm:$0xff] %v531
        %788 = vst [vmem:[%s137 + $0x428] sm:$0xff] %v532
        %789 = vst [vmem:[%s137 + $0x430] sm:$0xff] %v533
        %790 = vst [vmem:[%s137 + $0x438] sm:$0xff] %v534
        %791 = vst [vmem:[%s137 + $0x440] sm:$0xff] %v535
        %792 = vst [vmem:[%s137 + $0x448] sm:$0xff] %v536
        %793 = vst [vmem:[%s137 + $0x450] sm:$0xff] %v537
        %794 = vst [vmem:[%s137 + $0x458] sm:$0xff] %v538
        %795 = vst [vmem:[%s137 + $0x460] sm:$0xff] %v539
        %796 = vst [vmem:[%s137 + $0x468] sm:$0xff] %v540
        %797 = vst [vmem:[%s137 + $0x470] sm:$0xff] %v541
        %798 = vst [vmem:[%s137 + $0x478] sm:$0xff] %v542
        %799 = vst [vmem:[%s137 + $0x480] sm:$0xff] %v543
        %800 = vst [vmem:[%s137 + $0x488] sm:$0xff] %v544
        %801 = vst [vmem:[%s137 + $0x490] sm:$0xff] %v545
        %802 = vst [vmem:[%s137 + $0x498] sm:$0xff] %v546
        %803 = vst [vmem:[%s137 + $0x4a0] sm:$0xff] %v547
        %804 = vst [vmem:[%s137 + $0x4a8] sm:$0xff] %v548
        %805 = vst [vmem:[%s137 + $0x4b0] sm:$0xff] %v549
        %806 = vst [vmem:[%s137 + $0x4b8] sm:$0xff] %v550
        %807 = vst [vmem:[%s137 + $0x4c0] sm:$0xff] %v551
        %808 = vst [vmem:[%s137 + $0x4c8] sm:$0xff] %v552
        %809 = vst [vmem:[%s137 + $0x4d0] sm:$0xff] %v553
        %810 = vst [vmem:[%s137 + $0x4d8] sm:$0xff] %v554
        %811 = vst [vmem:[%s137 + $0x4e0] sm:$0xff] %v555
        %812 = vst [vmem:[%s137 + $0x4e8] sm:$0xff] %v556
        %813 = vst [vmem:[%s137 + $0x4f0] sm:$0xff] %v557
        %814 = vst [vmem:[%s137 + $0x4f8] sm:$0xff] %v558
        %815 = vst [vmem:[%s137 + $0x500] sm:$0xff] %v559
        %816 = vst [vmem:[%s137 + $0x508] sm:$0xff] %v560
        %817 = vst [vmem:[%s137 + $0x510] sm:$0xff] %v561
        %818 = vst [vmem:[%s137 + $0x518] sm:$0xff] %v562
        %819 = vst [vmem:[%s137 + $0x520] sm:$0xff] %v563
        %820 = vst [vmem:[%s137 + $0x528] sm:$0xff] %v564
        %821 = vst [vmem:[%s137 + $0x530] sm:$0xff] %v565
        %822 = vst [vmem:[%s137 + $0x538] sm:$0xff] %v566
        %823 = vst [vmem:[%s137 + $0x540] sm:$0xff] %v567
        %824 = vst [vmem:[%s137 + $0x548] sm:$0xff] %v568
        %825 = vst [vmem:[%s137 + $0x550] sm:$0xff] %v569
        %826 = vst [vmem:[%s137 + $0x558] sm:$0xff] %v570
        %827 = vst [vmem:[%s137 + $0x560] sm:$0xff] %v571
        %828 = vst [vmem:[%s137 + $0x568] sm:$0xff] %v572
        %829 = vst [vmem:[%s137 + $0x570] sm:$0xff] %v573
        %830 = vst [vmem:[%s137 + $0x578] sm:$0xff] %v574
        %831 = vst [vmem:[%s137 + $0x580] sm:$0xff] %v575
        %832 = vst [vmem:[%s137 + $0x588] sm:$0xff] %v576
        %833 = vst [vmem:[%s137 + $0x590] sm:$0xff] %v577
        %834 = vst [vmem:[%s137 + $0x598] sm:$0xff] %v578
        %835 = vst [vmem:[%s137 + $0x5a0] sm:$0xff] %v579
        %836 = vst [vmem:[%s137 + $0x5a8] sm:$0xff] %v580
        %837 = vst [vmem:[%s137 + $0x5b0] sm:$0xff] %v581
        %838 = vst [vmem:[%s137 + $0x5b8] sm:$0xff] %v582
        %839 = vst [vmem:[%s137 + $0x5c0] sm:$0xff] %v583
        %840 = vst [vmem:[%s137 + $0x5c8] sm:$0xff] %v584
        %841 = vst [vmem:[%s137 + $0x5d0] sm:$0xff] %v585
        %842 = vst [vmem:[%s137 + $0x5d8] sm:$0xff] %v586
        %843 = vst [vmem:[%s137 + $0x5e0] sm:$0xff] %v587
        %844 = vst [vmem:[%s137 + $0x5e8] sm:$0xff] %v588
        %845 = vst [vmem:[%s137 + $0x5f0] sm:$0xff] %v589
        %846 = vst [vmem:[%s137 + $0x5f8] sm:$0xff] %v590
        %847 = vst [vmem:[%s137 + $0x600] sm:$0xff] %v591
        %848 = vst [vmem:[%s137 + $0x608] sm:$0xff] %v592
        %849 = vst [vmem:[%s137 + $0x610] sm:$0xff] %v593
        %850 = vst [vmem:[%s137 + $0x618] sm:$0xff] %v594
        %851 = vst [vmem:[%s137 + $0x620] sm:$0xff] %v595
        %852 = vst [vmem:[%s137 + $0x628] sm:$0xff] %v596
        %853 = vst [vmem:[%s137 + $0x630] sm:$0xff] %v597
        %854 = vst [vmem:[%s137 + $0x638] sm:$0xff] %v598
        %855 = vst [vmem:[%s137 + $0x640] sm:$0xff] %v599
        %856 = vst [vmem:[%s137 + $0x648] sm:$0xff] %v600
        %857 = vst [vmem:[%s137 + $0x650] sm:$0xff] %v601
        %858 = vst [vmem:[%s137 + $0x658] sm:$0xff] %v602
        %859 = vst [vmem:[%s137 + $0x660] sm:$0xff] %v603
        %860 = vst [vmem:[%s137 + $0x668] sm:$0xff] %v604
        %861 = vst [vmem:[%s137 + $0x670] sm:$0xff] %v605
        %862 = vst [vmem:[%s137 + $0x678] sm:$0xff] %v606
        %863 = vst [vmem:[%s137 + $0x680] sm:$0xff] %v607
        %864 = vst [vmem:[%s137 + $0x688] sm:$0xff] %v608
        %865 = vst [vmem:[%s137 + $0x690] sm:$0xff] %v609
        %866 = vst [vmem:[%s137 + $0x698] sm:$0xff] %v610
        %867 = vst [vmem:[%s137 + $0x6a0] sm:$0xff] %v611
        %868 = vst [vmem:[%s137 + $0x6a8] sm:$0xff] %v612
        %869 = vst [vmem:[%s137 + $0x6b0] sm:$0xff] %v613
        %870 = vst [vmem:[%s137 + $0x6b8] sm:$0xff] %v614
        %871 = vst [vmem:[%s137 + $0x6c0] sm:$0xff] %v615
        %872 = vst [vmem:[%s137 + $0x6c8] sm:$0xff] %v616
        %873 = vst [vmem:[%s137 + $0x6d0] sm:$0xff] %v617
        %874 = vst [vmem:[%s137 + $0x6d8] sm:$0xff] %v618
        %875 = vst [vmem:[%s137 + $0x6e0] sm:$0xff] %v619
        %876 = vst [vmem:[%s137 + $0x6e8] sm:$0xff] %v620
        %877 = vst [vmem:[%s137 + $0x6f0] sm:$0xff] %v621
        %878 = vst [vmem:[%s137 + $0x6f8] sm:$0xff] %v622
        %879 = vst [vmem:[%s137 + $0x700] sm:$0xff] %v623
        %880 = vst [vmem:[%s137 + $0x708] sm:$0xff] %v624
        %881 = vst [vmem:[%s137 + $0x710] sm:$0xff] %v625
        %882 = vst [vmem:[%s137 + $0x718] sm:$0xff] %v626
        %883 = vst [vmem:[%s137 + $0x720] sm:$0xff] %v627
        %884 = vst [vmem:[%s137 + $0x728] sm:$0xff] %v628
        %885 = vst [vmem:[%s137 + $0x730] sm:$0xff] %v629
        %886 = vst [vmem:[%s137 + $0x738] sm:$0xff] %v630
        %887 = vst [vmem:[%s137 + $0x740] sm:$0xff] %v631
        %888 = vst [vmem:[%s137 + $0x748] sm:$0xff] %v632
        %889 = vst [vmem:[%s137 + $0x750] sm:$0xff] %v633
        %890 = vst [vmem:[%s137 + $0x758] sm:$0xff] %v634
        %891 = vst [vmem:[%s137 + $0x760] sm:$0xff] %v635
        %892 = vst [vmem:[%s137 + $0x768] sm:$0xff] %v636
        %893 = vst [vmem:[%s137 + $0x770] sm:$0xff] %v637
        %894 = vst [vmem:[%s137 + $0x778] sm:$0xff] %v638
        %895 = vst [vmem:[%s137 + $0x780] sm:$0xff] %v639
        %896 = vst [vmem:[%s137 + $0x788] sm:$0xff] %v640
        %897 = vst [vmem:[%s137 + $0x790] sm:$0xff] %v641
        %898 = vst [vmem:[%s137 + $0x798] sm:$0xff] %v642
        %899 = vst [vmem:[%s137 + $0x7a0] sm:$0xff] %v643
        %900 = vst [vmem:[%s137 + $0x7a8] sm:$0xff] %v644
        %901 = vst [vmem:[%s137 + $0x7b0] sm:$0xff] %v645
        %902 = vst [vmem:[%s137 + $0x7b8] sm:$0xff] %v646
        %903 = vst [vmem:[%s137 + $0x7c0] sm:$0xff] %v647
        %904 = vst [vmem:[%s137 + $0x7c8] sm:$0xff] %v648
        %905 = vst [vmem:[%s137 + $0x7d0] sm:$0xff] %v649
        %906 = vst [vmem:[%s137 + $0x7d8] sm:$0xff] %v650
        %907 = vst [vmem:[%s137 + $0x7e0] sm:$0xff] %v651
        %908 = vst [vmem:[%s137 + $0x7e8] sm:$0xff] %v652
        %909 = vst [vmem:[%s137 + $0x7f0] sm:$0xff] %v653
        %910 = vst [vmem:[%s137 + $0x7f8] sm:$0xff] %v654
        %s911 = sand.u32 %s54, 1
        %s912 = scalar_lea.sflag [#allocation6], %s911
        %s913 = sand.u32 %s54, 1
        %s914 = smul.addr %s913, 2048
        %s915 = scalar_lea.vmem [#allocation7], %s914
        // Predicated region
        $region29: #{tpu_custom_call.1} parent=23 // pred_check
          %p916 = pneg %p64
        $region30: #{tpu_custom_call.1} parent=23 // pred_check_branch
          %918 = sbr.rel (%p916) target = $region32
        $region31: #{tpu_custom_call.1} parent=23 // pred_region
          %s919 = smul.u32 8, %s20
          %s921 = ssub.s32 32768, 32768
          %922 = vsyncadd %s912, %s921
          %s923 = smul.addr %s919, 32
          %s924 = smul.addr %s923, 128
          %s925 = scalar_lea.hbm %s2, %s924
          %s926 = sshll.u32 %s915, 4
          %s927 = int_to_ptr.vmem [resolvable:$true] %s926
          %932 = dma.vmem_to_hbm [thread:$0]  %s927, 32768, %s925, %s912, 4096, 4096, 256
        $region32: #{tpu_custom_call.1} parent=23 // pred_fallthru
          _
      $region24: #{tpu_custom_call.1} parent=5 // pred_fallthru
        _
      %p933 = scmp.le.s32.totalorder 2, %s15
      // Predicated region
      $region33: #{tpu_custom_call.1} parent=5 // pred_check
        %p934 = pneg %p933
      $region34: #{tpu_custom_call.1} parent=5 // pred_check_branch
        %936 = sbr.rel (%p934) target = $region36
      $region35: #{tpu_custom_call.1} parent=5 // pred_region
        %s937 = ssub.s32 %s15, 2
        // Predicated region
        $region37: #{tpu_custom_call.1} parent=35 // pred_check
          %p938 = pneg %p70
        $region38: #{tpu_custom_call.1} parent=35 // pred_check_branch
          %940 = sbr.rel (%p938) target = $region40
        $region39: #{tpu_custom_call.1} parent=35 // pred_region
          %s941 = sand.u32 %s55, 1
          %s942 = scalar_lea.sflag [#allocation6], %s941
          %s943 = sand.u32 %s55, 1
          %s944 = smul.addr %s943, 2048
          %s945 = scalar_lea.vmem [#allocation7], %s944
          %946 = dma.done %s942, 32768
        $region40: #{tpu_custom_call.1} parent=35 // pred_fallthru
          _
      $region36: #{tpu_custom_call.1} parent=5 // pred_fallthru
        _
    $region6: #{tpu_custom_call.1} parent=1 // loop_footer
      %s19 = sadd.s32 1, %s15
    $region7: #{tpu_custom_call.1} parent=1 // loop_footer_branch
      %14 = sbr.rel target = $region3
    $region8: #{tpu_custom_call.1} parent=1 // loop_exit
      _
    %947 = vsyncpa [#allocation5], 1
    %s948 = scalar_lea.sflag [#allocation5], 1
    %949 = vsyncpa %s948, 1
    %950 = vsyncpa [#allocation6], 1
    %s951 = scalar_lea.sflag [#allocation6], 1
    %952 = vsyncpa %s951, 1

</llo_original>
